<compile_context>
chip_gen: v7x
topology: tpu7x:2x2x1
jax: 0.10.0
libtpu: 0.0.40
codegen_flags: <defaults>
</compile_context>

<pallas_src>
import jax
import jax.numpy as jnp
from jax import lax
from jax.experimental import pallas as pl
from jax.experimental.pallas import tpu as pltpu

# ----------------------------- configuration -------------------------------
H_IMG, W_IMG, CH = 16, 16, 3        # input image (H, W, 3)
PATCH = 4
HP, WP = H_IMG // PATCH, W_IMG // PATCH
P = HP * WP                          # spatial tokens in image embedding (16)
D_PATCH = PATCH * PATCH * CH         # flattened patch dim (48)
C = 32                               # embedding dim
C_UP = 8                             # "upscaled" decoder channel dim (folded away)
NUM_TOKENS = 4                       # SAM mask tokens (only token 0 is used)
B = 2                                # number of boxes
TARGET_LEN = 32                      # ResizeLongestSide target length

# ResizeLongestSide + pixel-center + [-1,1] mapping folded into one affine:
#   c = 2*((x*scale + 0.5)/TARGET_LEN) - 1 = x*COORD_A + COORD_B
RESIZE_SCALE = float(TARGET_LEN) / float(max(H_IMG, W_IMG))
COORD_A = 2.0 * RESIZE_SCALE / float(TARGET_LEN)
COORD_B = 1.0 / float(TARGET_LEN) - 1.0
QCOEF = 0.5 / (C ** 0.5)             # corner-mean * attention 1/sqrt(C), folded

# ------------------------- packed parameter slab ---------------------------
PW_OFF = 0                           # rows  0:48  patch_w           (48, C)
WC_OFF = PW_OFF + D_PATCH            # rows 48:80  W_comb = Wh@Wu^T  (C,  C)
PB_ROW = WC_OFF + C                  # row  80     patch bias        (1,  C)
G_OFF = PB_ROW + 1                   # rows 81:83  2*pi*Gauss (dup)  (2,  C)
PH_ROW = G_OFF + 2                   # row  83     phase 0 | pi/2    (1,  C)
BIAS_ROW = PH_ROW + 1                # row  84     (tok0+mean ce)/sqrt(C)
SLAB_ROWS = 88                       # padded to a sublane multiple


# ------------------------------ fused kernel --------------------------------
def sambox_fused_kernel(patches_ref, boxes_ref, slab_ref, o_ref, q_ref):
    f32 = jnp.float32
    bf16 = jnp.bfloat16

    # 1) image "encoder": patch-embed matmul (bf16 MXU operands, f32 accum).
    patches_bf = patches_ref[...].astype(bf16)                          # (P, D_PATCH)
    pw_bf = slab_ref[PW_OFF:PW_OFF + D_PATCH, :].astype(bf16)           # (D_PATCH, C)
    img = jnp.dot(patches_bf, pw_bf, preferred_element_type=f32)        # (P, C)
    img = img + slab_ref[PB_ROW:PB_ROW + 1, :]                          # + patch bias
    img_bf = img.astype(bf16)

    # 2) box-independent decoder pre-work:
    #    M_img = img @ (w_hyper @ w_up^T) @ img^T   -> (P, P)
    wcomb_bf = slab_ref[WC_OFF:WC_OFF + C, :].astype(bf16)              # (C, C)
    img_w = jnp.dot(img_bf, wcomb_bf, preferred_element_type=f32)       # (P, C)
    m_img = lax.dot_general(img_w.astype(bf16), img_bf,
                            (((1,), (1,)), ((), ())),
                            preferred_element_type=f32)                 # (P, P)
    m_img_bf = m_img.astype(bf16)

    # 3) prompt encoder: SMEM scalar box coords -> Fourier PE (scalar+VPU+EUP).
    #    Gaussian rows are duplicated across lanes and pre-scaled by 2*pi;
    #    the phase row [0.. | pi/2..] makes a single sin produce [sin | cos].
    g0 = slab_ref[G_OFF:G_OFF + 1, :]                                   # (1, C)
    g1 = slab_ref[G_OFF + 1:G_OFF + 2, :]                               # (1, C)
    phase = slab_ref[PH_ROW:PH_ROW + 1, :]                              # (1, C)
    bias = slab_ref[BIAS_ROW:BIAS_ROW + 1, :]                           # (1, C)

    for b in range(B):  # static unroll (B = 2)
        x0 = boxes_ref[b, 0] * COORD_A + COORD_B                        # scalar unit
        y0 = boxes_ref[b, 1] * COORD_A + COORD_B
        x1 = boxes_ref[b, 2] * COORD_A + COORD_B
        y1 = boxes_ref[b, 3] * COORD_A + COORD_B
        pe0 = jnp.sin(x0 * g0 + y0 * g1 + phase)                        # (1, C)
        pe1 = jnp.sin(x1 * g0 + y1 * g1 + phase)                        # (1, C)
        # pre-scaled query row: (0.5*(pe0+pe1) + tok0 + mean(ce)) / sqrt(C)
        q_ref[b:b + 1, :] = QCOEF * (pe0 + pe1) + bias

    q_bf = q_ref[...].astype(bf16)                                      # (B, C)

    # 4) attention logits + softmax (f32 VPU/EUP; scale already folded into q).
    logits = lax.dot_general(q_bf, img_bf, (((1,), (1,)), ((), ())),
                             preferred_element_type=f32)                # (B, P)
    logits = logits - jnp.max(logits, axis=-1, keepdims=True)
    e = jnp.exp(logits)
    attn = e * pl.reciprocal(jnp.sum(e, axis=-1, keepdims=True), approx=True)

    # 5) mask logits: ONE MXU op on the box-dependent path; token 0 only.
    o_ref[...] = jnp.dot(attn.astype(bf16), m_img_bf,
                         preferred_element_type=f32)                    # (B, P)


def sambox_fused(patches, boxes, slab):
    return pl.pallas_call(
        sambox_fused_kernel,
        out_shape=jax.ShapeDtypeStruct((B, P), jnp.float32),
        # no grid: single invocation, no pipeline bookkeeping
        in_specs=[
            pl.BlockSpec(memory_space=pltpu.MemorySpace.VMEM),   # patches
            pl.BlockSpec(memory_space=pltpu.MemorySpace.SMEM),   # boxes (scalars)
            pl.BlockSpec(memory_space=pltpu.MemorySpace.VMEM),   # packed param slab
        ],
        out_specs=pl.BlockSpec(memory_space=pltpu.MemorySpace.VMEM),
        scratch_shapes=[pltpu.VMEM((B, C), jnp.float32)],        # assembled queries
        cost_estimate=pl.CostEstimate(flops=110_000, transcendentals=200,
                                      bytes_accessed=16_384),
    )(patches, boxes, slab)


# ------------------------------ SamBox forward -------------------------------
def sambox_forward(image, boxes, slab):
    """image: (H, W, 3) f32; boxes: (B, 4) xyxy f32 -> (B, 1, h, w) f32."""
    # Patchify glue (pure layout) — jit-fused with the producer of `image`.
    # TODO(synk): folding this transpose into the kernel needs a lane-splitting
    # relayout in Mosaic; kept as host glue since it is 3 KB and fuses under jit.
    patches = image.reshape(HP, PATCH, WP, PATCH, CH)
    patches = patches.transpose(0, 2, 1, 3, 4).reshape(P, D_PATCH)

    masks = sambox_fused(patches, boxes.astype(jnp.float32), slab)       # (B, P)

    # multimask_output=False -> mask 0 already selected inside the kernel;
    # postprocess -> [:, 0:1].float()  (pure reshape, no data movement).
    # TODO(synk): SAM's bilinear upsample to the original (H, W) is not
    # reproduced; low-res masks are returned.
    return masks.reshape(B, 1, HP, WP).astype(jnp.float32)


# ------------------------ parameter init + packing ---------------------------
def init_params(key):
    k = jax.random.split(key, 6)
    return {
        "patch_w": jax.random.normal(k[0], (D_PATCH, C), jnp.float32) * 0.02,
        "patch_b": jnp.zeros((1, C), jnp.float32),
        "pe_gauss": jax.random.normal(k[1], (2, C // 2), jnp.float32),
        "corner_embed": jax.random.normal(k[2], (2, C), jnp.float32) * 0.02,
        "mask_tokens": jax.random.normal(k[3], (NUM_TOKENS, C), jnp.float32) * 0.02,
        "w_hyper": jax.random.normal(k[4], (C, C_UP), jnp.float32) * 0.02,
        "w_up": jax.random.normal(k[5], (C, C_UP), jnp.float32) * 0.02,
    }


def pack_params(p):
    """One-time host-side algebraic folding + packing into a single DMA slab."""
    w_comb = p["w_hyper"] @ p["w_up"].T                                  # (C, C)
    gdup = jnp.tile(p["pe_gauss"], (1, 2)) * (2.0 * jnp.pi)              # (2, C)
    phase = jnp.concatenate(
        [jnp.zeros((1, C // 2), jnp.float32),
         jnp.full((1, C // 2), jnp.pi / 2, jnp.float32)], axis=-1)       # (1, C)
    bias = (p["mask_tokens"][0:1]
            + 0.5 * (p["corner_embed"][0:1] + p["corner_embed"][1:2])) / (C ** 0.5)

    slab = jnp.zeros((SLAB_ROWS, C), jnp.float32)
    slab = slab.at[PW_OFF:PW_OFF + D_PATCH].set(p["patch_w"])
    slab = slab.at[WC_OFF:WC_OFF + C].set(w_comb)
    slab = slab.at[PB_ROW].set(p["patch_b"][0])
    slab = slab.at[G_OFF:G_OFF + 2].set(gdup)
    slab = slab.at[PH_ROW].set(phase[0])
    slab = slab.at[BIAS_ROW].set(bias[0])
    return slab


if __name__ == "__main__":
    key = jax.random.PRNGKey(0)
    k_img, k_box, k_par = jax.random.split(key, 3)

    image = jax.random.uniform(k_img, (H_IMG, W_IMG, CH), jnp.float32) * 255.0
    # random xyxy boxes inside the image
    xy0 = jax.random.uniform(k_box, (B, 2), jnp.float32) * (H_IMG / 2)
    boxes = jnp.concatenate([xy0, xy0 + H_IMG / 2], axis=-1)             # (B, 4)

    slab = pack_params(init_params(k_par))

    fwd = jax.jit(sambox_forward)
    masks = jax.block_until_ready(fwd(image, boxes, slab))
    assert masks.shape == (B, 1, HP, WP) and masks.dtype == jnp.float32
    assert bool(jnp.all(jnp.isfinite(masks)))
    print("KERNEL_OK")
</pallas_src>

<mosaic_0001>
module attributes {stable_mosaic.version = 11 : i64} {
  func.func @sambox_fused_kernel(%arg0: memref<16x48xf32, #tpu.memory_space<vmem>>, %arg1: memref<2x4xf32, #tpu.memory_space<smem>>, %arg2: memref<88x32xf32, #tpu.memory_space<vmem>>, %arg3: memref<2x16xf32, #tpu.memory_space<vmem>>, %arg4: memref<2x32xf32, #tpu.memory_space<vmem>>) attributes {dimension_semantics = [], scalar_prefetch = 0 : i64, scratch_operands = 1 : i64, tpu.core_type = #tpu.core_type<tc>} {
    %c0 = arith.constant 0 : index
    %c0_0 = arith.constant 0 : index
    %0 = vector.load %arg0[%c0, %c0_0] : memref<16x48xf32, #tpu.memory_space<vmem>>, vector<16x48xf32>
    %1 = arith.truncf %0 : vector<16x48xf32> to vector<16x48xbf16>
    %c0_1 = arith.constant 0 : index
    %c0_2 = arith.constant 0 : index
    %2 = vector.load %arg2[%c0_1, %c0_2] : memref<88x32xf32, #tpu.memory_space<vmem>>, vector<48x32xf32>
    %3 = arith.truncf %2 : vector<48x32xf32> to vector<48x32xbf16>
    %cst = arith.constant dense<0.000000e+00> : vector<16x32xf32>
    %4 = tpu.matmul %1, %3, %cst {dimension_numbers = #tpu.dot_dimension_numbers<[1], [0], [0], [1], [0, 0, 1, 1], [], []>} : vector<16x48xbf16>, vector<48x32xbf16>, vector<16x32xf32> -> vector<16x32xf32>
    %c80 = arith.constant 80 : index
    %c0_3 = arith.constant 0 : index
    %5 = vector.load %arg2[%c80, %c0_3] : memref<88x32xf32, #tpu.memory_space<vmem>>, vector<1x32xf32>
    %6 = vector.broadcast %5 : vector<1x32xf32> to vector<16x32xf32>
    %7 = arith.addf %4, %6 : vector<16x32xf32>
    %8 = arith.truncf %7 : vector<16x32xf32> to vector<16x32xbf16>
    %c48 = arith.constant 48 : index
    %c0_4 = arith.constant 0 : index
    %9 = vector.load %arg2[%c48, %c0_4] : memref<88x32xf32, #tpu.memory_space<vmem>>, vector<32x32xf32>
    %10 = arith.truncf %9 : vector<32x32xf32> to vector<32x32xbf16>
    %cst_5 = arith.constant dense<0.000000e+00> : vector<16x32xf32>
    %11 = tpu.matmul %8, %10, %cst_5 {dimension_numbers = #tpu.dot_dimension_numbers<[1], [0], [0], [1], [0, 0, 1, 1], [], []>} : vector<16x32xbf16>, vector<32x32xbf16>, vector<16x32xf32> -> vector<16x32xf32>
    %12 = arith.truncf %11 : vector<16x32xf32> to vector<16x32xbf16>
    %cst_6 = arith.constant dense<0.000000e+00> : vector<16x16xf32>
    %13 = tpu.matmul %12, %8, %cst_6 {dimension_numbers = #tpu.dot_dimension_numbers<[1], [1], [0], [0], [0, 0, 1, 0], [], []>} : vector<16x32xbf16>, vector<16x32xbf16>, vector<16x16xf32> -> vector<16x16xf32>
    %14 = arith.truncf %13 : vector<16x16xf32> to vector<16x16xbf16>
    %c81 = arith.constant 81 : index
    %c0_7 = arith.constant 0 : index
    %15 = vector.load %arg2[%c81, %c0_7] : memref<88x32xf32, #tpu.memory_space<vmem>>, vector<1x32xf32>
    %c82 = arith.constant 82 : index
    %c0_8 = arith.constant 0 : index
    %16 = vector.load %arg2[%c82, %c0_8] : memref<88x32xf32, #tpu.memory_space<vmem>>, vector<1x32xf32>
    %c83 = arith.constant 83 : index
    %c0_9 = arith.constant 0 : index
    %17 = vector.load %arg2[%c83, %c0_9] : memref<88x32xf32, #tpu.memory_space<vmem>>, vector<1x32xf32>
    %c84 = arith.constant 84 : index
    %c0_10 = arith.constant 0 : index
    %18 = vector.load %arg2[%c84, %c0_10] : memref<88x32xf32, #tpu.memory_space<vmem>>, vector<1x32xf32>
    %c0_11 = arith.constant 0 : index
    %c0_12 = arith.constant 0 : index
    %19 = memref.load %arg1[%c0_11, %c0_12] : memref<2x4xf32, #tpu.memory_space<smem>>
    %cst_13 = arith.constant 1.250000e-01 : f32
    %20 = arith.mulf %19, %cst_13 : f32
    %cst_14 = arith.constant -9.687500e-01 : f32
    %21 = arith.addf %20, %cst_14 : f32
    %c0_15 = arith.constant 0 : index
    %c1 = arith.constant 1 : index
    %22 = memref.load %arg1[%c0_15, %c1] : memref<2x4xf32, #tpu.memory_space<smem>>
    %cst_16 = arith.constant 1.250000e-01 : f32
    %23 = arith.mulf %22, %cst_16 : f32
    %cst_17 = arith.constant -9.687500e-01 : f32
    %24 = arith.addf %23, %cst_17 : f32
    %c0_18 = arith.constant 0 : index
    %c2 = arith.constant 2 : index
    %25 = memref.load %arg1[%c0_18, %c2] : memref<2x4xf32, #tpu.memory_space<smem>>
    %cst_19 = arith.constant 1.250000e-01 : f32
    %26 = arith.mulf %25, %cst_19 : f32
    %cst_20 = arith.constant -9.687500e-01 : f32
    %27 = arith.addf %26, %cst_20 : f32
    %c0_21 = arith.constant 0 : index
    %c3 = arith.constant 3 : index
    %28 = memref.load %arg1[%c0_21, %c3] : memref<2x4xf32, #tpu.memory_space<smem>>
    %cst_22 = arith.constant 1.250000e-01 : f32
    %29 = arith.mulf %28, %cst_22 : f32
    %cst_23 = arith.constant -9.687500e-01 : f32
    %30 = arith.addf %29, %cst_23 : f32
    %31 = vector.broadcast %21 : f32 to vector<1x32xf32>
    %32 = arith.mulf %31, %15 : vector<1x32xf32>
    %33 = vector.broadcast %24 : f32 to vector<1x32xf32>
    %34 = arith.mulf %33, %16 : vector<1x32xf32>
    %35 = arith.addf %32, %34 : vector<1x32xf32>
    %36 = arith.addf %35, %17 : vector<1x32xf32>
    %37 = math.sin %36 : vector<1x32xf32>
    %38 = vector.broadcast %27 : f32 to vector<1x32xf32>
    %39 = arith.mulf %38, %15 : vector<1x32xf32>
    %40 = vector.broadcast %30 : f32 to vector<1x32xf32>
    %41 = arith.mulf %40, %16 : vector<1x32xf32>
    %42 = arith.addf %39, %41 : vector<1x32xf32>
    %43 = arith.addf %42, %17 : vector<1x32xf32>
    %44 = math.sin %43 : vector<1x32xf32>
    %45 = arith.addf %37, %44 : vector<1x32xf32>
    %cst_24 = arith.constant 0.0883883461 : f32
    %46 = vector.broadcast %cst_24 : f32 to vector<1x32xf32>
    %47 = arith.mulf %46, %45 : vector<1x32xf32>
    %48 = arith.addf %47, %18 : vector<1x32xf32>
    %c0_25 = arith.constant 0 : index
    %c0_26 = arith.constant 0 : index
    %49 = vector.load %arg4[%c0_25, %c0_26] : memref<2x32xf32, #tpu.memory_space<vmem>>, vector<1x32xf32>
    tpu.vector_store %arg4[%c0_25, %c0_26], %48 {strides = array<i32>} : memref<2x32xf32, #tpu.memory_space<vmem>>, vector<1x32xf32>,
    %c1_27 = arith.constant 1 : index
    %c0_28 = arith.constant 0 : index
    %50 = memref.load %arg1[%c1_27, %c0_28] : memref<2x4xf32, #tpu.memory_space<smem>>
    %cst_29 = arith.constant 1.250000e-01 : f32
    %51 = arith.mulf %50, %cst_29 : f32
    %cst_30 = arith.constant -9.687500e-01 : f32
    %52 = arith.addf %51, %cst_30 : f32
    %c1_31 = arith.constant 1 : index
    %c1_32 = arith.constant 1 : index
    %53 = memref.load %arg1[%c1_31, %c1_32] : memref<2x4xf32, #tpu.memory_space<smem>>
    %cst_33 = arith.constant 1.250000e-01 : f32
    %54 = arith.mulf %53, %cst_33 : f32
    %cst_34 = arith.constant -9.687500e-01 : f32
    %55 = arith.addf %54, %cst_34 : f32
    %c1_35 = arith.constant 1 : index
    %c2_36 = arith.constant 2 : index
    %56 = memref.load %arg1[%c1_35, %c2_36] : memref<2x4xf32, #tpu.memory_space<smem>>
    %cst_37 = arith.constant 1.250000e-01 : f32
    %57 = arith.mulf %56, %cst_37 : f32
    %cst_38 = arith.constant -9.687500e-01 : f32
    %58 = arith.addf %57, %cst_38 : f32
    %c1_39 = arith.constant 1 : index
    %c3_40 = arith.constant 3 : index
    %59 = memref.load %arg1[%c1_39, %c3_40] : memref<2x4xf32, #tpu.memory_space<smem>>
    %cst_41 = arith.constant 1.250000e-01 : f32
    %60 = arith.mulf %59, %cst_41 : f32
    %cst_42 = arith.constant -9.687500e-01 : f32
    %61 = arith.addf %60, %cst_42 : f32
    %62 = vector.broadcast %52 : f32 to vector<1x32xf32>
    %63 = arith.mulf %62, %15 : vector<1x32xf32>
    %64 = vector.broadcast %55 : f32 to vector<1x32xf32>
    %65 = arith.mulf %64, %16 : vector<1x32xf32>
    %66 = arith.addf %63, %65 : vector<1x32xf32>
    %67 = arith.addf %66, %17 : vector<1x32xf32>
    %68 = math.sin %67 : vector<1x32xf32>
    %69 = vector.broadcast %58 : f32 to vector<1x32xf32>
    %70 = arith.mulf %69, %15 : vector<1x32xf32>
    %71 = vector.broadcast %61 : f32 to vector<1x32xf32>
    %72 = arith.mulf %71, %16 : vector<1x32xf32>
    %73 = arith.addf %70, %72 : vector<1x32xf32>
    %74 = arith.addf %73, %17 : vector<1x32xf32>
    %75 = math.sin %74 : vector<1x32xf32>
    %76 = arith.addf %68, %75 : vector<1x32xf32>
    %cst_43 = arith.constant 0.0883883461 : f32
    %77 = vector.broadcast %cst_43 : f32 to vector<1x32xf32>
    %78 = arith.mulf %77, %76 : vector<1x32xf32>
    %79 = arith.addf %78, %18 : vector<1x32xf32>
    %c1_44 = arith.constant 1 : index
    %c0_45 = arith.constant 0 : index
    %80 = vector.load %arg4[%c1_44, %c0_45] : memref<2x32xf32, #tpu.memory_space<vmem>>, vector<1x32xf32>
    tpu.vector_store %arg4[%c1_44, %c0_45], %79 {strides = array<i32>} : memref<2x32xf32, #tpu.memory_space<vmem>>, vector<1x32xf32>,
    %c0_46 = arith.constant 0 : index
    %c0_47 = arith.constant 0 : index
    %81 = vector.load %arg4[%c0_46, %c0_47] : memref<2x32xf32, #tpu.memory_space<vmem>>, vector<2x32xf32>
    %82 = arith.truncf %81 : vector<2x32xf32> to vector<2x32xbf16>
    %cst_48 = arith.constant dense<0.000000e+00> : vector<2x16xf32>
    %83 = tpu.matmul %82, %8, %cst_48 {dimension_numbers = #tpu.dot_dimension_numbers<[1], [1], [0], [0], [0, 0, 1, 0], [], []>} : vector<2x32xbf16>, vector<16x32xbf16>, vector<2x16xf32> -> vector<2x16xf32>
    %cst_49 = arith.constant dense<0xFF800000> : vector<2xf32>
    %84 = vector.multi_reduction <maximumf>, %83, %cst_49 [1] : vector<2x16xf32> to vector<2xf32>
    %85 = vector.shape_cast %84 : vector<2xf32> to vector<2x1xf32>
    %86 = vector.broadcast %85 : vector<2x1xf32> to vector<2x16xf32>
    %87 = arith.subf %83, %86 : vector<2x16xf32>
    %88 = math.exp %87 : vector<2x16xf32>
    %cst_50 = arith.constant dense<0.000000e+00> : vector<2xf32>
    %89 = vector.multi_reduction <add>, %88, %cst_50 [1] : vector<2x16xf32> to vector<2xf32>
    %90 = vector.shape_cast %89 : vector<2xf32> to vector<2x1xf32>
    %91 = tpu.reciprocal %90 {approx = true} : vector<2x1xf32> -> vector<2x1xf32>
    %92 = vector.broadcast %91 : vector<2x1xf32> to vector<2x16xf32>
    %93 = arith.mulf %88, %92 : vector<2x16xf32>
    %94 = arith.truncf %93 : vector<2x16xf32> to vector<2x16xbf16>
    %cst_51 = arith.constant dense<0.000000e+00> : vector<2x16xf32>
    %95 = tpu.matmul %94, %14, %cst_51 {dimension_numbers = #tpu.dot_dimension_numbers<[1], [0], [0], [1], [0, 0, 1, 1], [], []>} : vector<2x16xbf16>, vector<16x16xbf16>, vector<2x16xf32> -> vector<2x16xf32>
    %c0_52 = arith.constant 0 : index
    %c0_53 = arith.constant 0 : index
    %96 = vector.load %arg3[%c0_52, %c0_53] : memref<2x16xf32, #tpu.memory_space<vmem>>, vector<2x16xf32>
    tpu.vector_store %arg3[%c0_52, %c0_53], %95 {strides = array<i32>} : memref<2x16xf32, #tpu.memory_space<vmem>>, vector<2x16xf32>,
    return
  }
}

</mosaic_0001>

<llo_original>
// kernel: sambox_forward.1
$region0: #{sambox_forward.1}
  #allocation0 [shape = 'u32[]', space=smem, size = 0x4, offset = 0x4, fixed_abs, tag = 'smem constant byte address 0x4 - core index']
  #allocation1 [shape = 'u32[144,128]{1,0:T(1,128)}', space=vmem, size = 0x12000, scoped, tag = 'internal scratch']
  #allocation2 [shape = 'f32[2,32]{1,0:T(2,128)}', space=vmem, size = 0x400, scoped, tag = 'scratch operand']
  %s0 = inlined_call_operand.vmem [shape: f32[16,48], index: 0, kind: input, shape index: {}]
  %s1 = inlined_call_operand.vmem [shape: f32[2,4], index: 1, kind: input, shape index: {}]
  %s2 = inlined_call_operand.vmem [shape: f32[88,32], index: 2, kind: input, shape index: {}]
  %s3 = inlined_call_operand.vmem [shape: f32[2,16], index: 3, kind: output, shape index: {}]
  %s4 = sld [smem:[#allocation0]]
  $region26: #{sambox_forward.1} parent=0
    _
  %s6 = ssub.s32 1, %s4
  %s7 = scalar_select 0, %s6, %s4
  $region1: #{sambox_forward.1} parent=0
    #allocation3 [shape = 'u8[1024]{0}', space=smem, size = 0x400, scoped, tag = 'input window, operand 1, single buffered']
    #allocation4 [shape = 's32[1]{0}', space=sflag, size = 0x4, scoped, tag = 'scoped memory for sambox_forward.1']
    %8 = vsyncpa [#allocation4], 0
    // Predicated region
    $region2: #{sambox_forward.1} parent=1 // pred_check
      _
    $region3: #{sambox_forward.1} parent=1 // pred_check_branch
      %10 = sbr.rel (0) target = $region5
    $region4: #{sambox_forward.1} parent=1 // pred_region
      _
    $region5: #{sambox_forward.1} parent=1 // pred_fallthru
      _
    // Predicated region
    $region6: #{sambox_forward.1} parent=1 // pred_check
      _
    $region7: #{sambox_forward.1} parent=1 // pred_check_branch
      %12 = sbr.rel (0) target = $region9
    $region8: #{sambox_forward.1} parent=1 // pred_region
      %s14 = ssub.s32 32, 32
      %15 = vsyncadd [#allocation4], %s14
      %s17 = sshll.u32 %s1, 4
      %s18 = int_to_ptr.vmem [resolvable:$true] %s17
      %20 = dma.vmem_to_smem %s18, 32, [#allocation3], [#allocation4]
    $region9: #{sambox_forward.1} parent=1 // pred_fallthru
      _
    // Predicated region
    $region10: #{sambox_forward.1} parent=1 // pred_check
      _
    $region11: #{sambox_forward.1} parent=1 // pred_check_branch
      %22 = sbr.rel (0) target = $region13
    $region12: #{sambox_forward.1} parent=1 // pred_region
      _
    $region13: #{sambox_forward.1} parent=1 // pred_fallthru
      _
    // Predicated region
    $region14: #{sambox_forward.1} parent=1 // pred_check
      _
    $region15: #{sambox_forward.1} parent=1 // pred_check_branch
      %24 = sbr.rel (0) target = $region17
    $region16: #{sambox_forward.1} parent=1 // pred_region
      %25 = dma.done [#allocation4], 32
    $region17: #{sambox_forward.1} parent=1 // pred_fallthru
      _
    %26 = sfence
    %v28 = vld [vmem:[%s0] sm:$0xff]
    %v29 = vld [vmem:[%s0 + $0x8] sm:$0xff]
    %v30 = vpack.c.bf16 %v29, %v28
    %v31 = vld [vmem:[%s2] sm:$0xff]
    %v32 = vld [vmem:[%s2 + $0x8] sm:$0xff]
    %v33 = vld [vmem:[%s2 + $0x10] sm:$0xff]
    %v34 = vld [vmem:[%s2 + $0x18] sm:$0xff]
    %v35 = vld [vmem:[%s2 + $0x20] sm:$0xff]
    %v36 = vld [vmem:[%s2 + $0x28] sm:$0xff]
    %v37 = vpack.c.bf16 %v32, %v31
    %v38 = vpack.c.bf16 %v34, %v33
    %v39 = vpack.c.bf16 %v36, %v35
    %v40 = vld [vmem:[%s2 + $0x50] sm:$0x1]
    %v41 = vlaneseq
    %v42 = vshrl.u32 %v41, 7
    %v43 = vsub.s32 0, %v42
    %v44 = vrot.slane %v40, %v43
    %vm45 = vcmask 392192
    %v47 = vsel %vm45, %v30, 0
    %49 = vmatprep.subr.bf16.mxu0 0
    %50 = vmatpush1.bf16.msra.mxu0 %v37
    %51 = vmatprep.subr.bf16.mxu0 0
    %52 = vmatpush1.bf16.msra.mxu0 %v38
    %53 = vmatprep.subr.bf16.mxu0 0
    %54 = vmatpush1.bf16.msra.mxu0 %v39
    %55 = vmatprep.subr.bf16.mxu0 0
    %56 = vmatpush1.bf16.msra.mxu0 0
    %57 = vmatprep.subr.bf16.mxu0 0
    %58 = vmatpush1.bf16.msra.mxu0 0
    %59 = vmatprep.subr.bf16.mxu0 0
    %60 = vmatpush1.bf16.msra.mxu0 0
    %61 = vmatprep.subr.bf16.mxu0 0
    %62 = vmatpush1.bf16.msra.mxu0 0
    %63 = vmatprep.subr.bf16.mxu0 0
    %64 = vmatpush1.bf16.msra.mxu0 0
    %65 = vmatprep.subr.bf16.mxu0 0
    %66 = vmatpush1.bf16.msra.mxu0 0
    %67 = vmatprep.subr.bf16.mxu0 0
    %68 = vmatpush1.bf16.msra.mxu0 0
    %69 = vmatprep.subr.bf16.mxu0 0
    %70 = vmatpush1.bf16.msra.mxu0 0
    %71 = vmatprep.subr.bf16.mxu0 0
    %72 = vmatpush1.bf16.msra.mxu0 0
    %73 = vmatprep.subr.bf16.mxu0 0
    %74 = vmatpush1.bf16.msra.mxu0 0
    %75 = vmatprep.subr.bf16.mxu0 0
    %76 = vmatpush1.bf16.msra.mxu0 0
    %77 = vmatprep.subr.bf16.mxu0 0
    %78 = vmatpush1.bf16.msra.mxu0 0
    %79 = vmatprep.subr.bf16.mxu0 0
    %80 = vmatpush1.bf16.msra.mxu0 0
    %81 = vmatprep.mubr.bf16.mxu0 0
    %82 = vmatmul.mubr.bf16.gmra.mrb[0].mxu0 %v47
    %v83 = vpop.f32.mrb[0].mxu0
    %v84 = vadd.f32 %v44, %v83
    %v85 = vpop.f32.mrb[0].mxu0
    %v86 = vpop.f32.mrb[0].mxu0
    %v87 = vadd.f32 %v44, %v86
    %v88 = vpop.f32.mrb[0].mxu0
    %89 = vdwg.mxu0
    %v90 = vpack.c.bf16 %v87, %v84
    %v91 = vld [vmem:[%s2 + $0x30] sm:$0xff]
    %v92 = vld [vmem:[%s2 + $0x38] sm:$0xff]
    %v93 = vld [vmem:[%s2 + $0x40] sm:$0xff]
    %v94 = vld [vmem:[%s2 + $0x48] sm:$0xff]
    %v95 = vpack.c.bf16 %v92, %v91
    %v96 = vpack.c.bf16 %v94, %v93
    %vm97 = vcmask 261120
    %v99 = vsel %vm97, %v90, 0
    %101 = vmatprep.subr.bf16.mxu0 0
    %102 = vmatpush1.bf16.msra.mxu0 %v95
    %103 = vmatprep.subr.bf16.mxu0 0
    %104 = vmatpush1.bf16.msra.mxu0 %v96
    %105 = vmatprep.subr.bf16.mxu0 0
    %106 = vmatpush1.bf16.msra.mxu0 0
    %107 = vmatprep.subr.bf16.mxu0 0
    %108 = vmatpush1.bf16.msra.mxu0 0
    %109 = vmatprep.subr.bf16.mxu0 0
    %110 = vmatpush1.bf16.msra.mxu0 0
    %111 = vmatprep.subr.bf16.mxu0 0
    %112 = vmatpush1.bf16.msra.mxu0 0
    %113 = vmatprep.subr.bf16.mxu0 0
    %114 = vmatpush1.bf16.msra.mxu0 0
    %115 = vmatprep.subr.bf16.mxu0 0
    %116 = vmatpush1.bf16.msra.mxu0 0
    %117 = vmatprep.subr.bf16.mxu0 0
    %118 = vmatpush1.bf16.msra.mxu0 0
    %119 = vmatprep.subr.bf16.mxu0 0
    %120 = vmatpush1.bf16.msra.mxu0 0
    %121 = vmatprep.subr.bf16.mxu0 0
    %122 = vmatpush1.bf16.msra.mxu0 0
    %123 = vmatprep.subr.bf16.mxu0 0
    %124 = vmatpush1.bf16.msra.mxu0 0
    %125 = vmatprep.subr.bf16.mxu0 0
    %126 = vmatpush1.bf16.msra.mxu0 0
    %127 = vmatprep.subr.bf16.mxu0 0
    %128 = vmatpush1.bf16.msra.mxu0 0
    %129 = vmatprep.subr.bf16.mxu0 0
    %130 = vmatpush1.bf16.msra.mxu0 0
    %131 = vmatprep.subr.bf16.mxu0 0
    %132 = vmatpush1.bf16.msra.mxu0 0
    %133 = vmatprep.mubr.bf16.mxu0 0
    %134 = vmatmul.mubr.bf16.gmra.mrb[0].mxu0 %v99
    %v135 = vpop.f32.mrb[0].mxu0
    %v136 = vadd.f32 0.0, %v135
    %v137 = vpop.f32.mrb[0].mxu0
    %v138 = vpop.f32.mrb[0].mxu0
    %v139 = vadd.f32 0.0, %v138
    %v140 = vpop.f32.mrb[0].mxu0
    %141 = vdwg.mxu0
    %v142 = vpack.c.bf16 %v139, %v136
    %v144 = vsel %vm97, %v142, 0
    %146 = vmatprep.subr.bf16.mxu0 0
    %147 = vmatpush1.bf16.xpose.msra.mxu0 %v99
    %148 = vmatprep.subr.bf16.mxu0 0
    %149 = vmatpush1.bf16.xpose.msra.mxu0 0
    %150 = vmatprep.subr.bf16.mxu0 0
    %151 = vmatpush1.bf16.xpose.msra.mxu0 0
    %152 = vmatprep.subr.bf16.mxu0 0
    %153 = vmatpush1.bf16.xpose.msra.mxu0 0
    %154 = vmatprep.subr.bf16.mxu0 0
    %155 = vmatpush1.bf16.xpose.msra.mxu0 0
    %156 = vmatprep.subr.bf16.mxu0 0
    %157 = vmatpush1.bf16.xpose.msra.mxu0 0
    %158 = vmatprep.subr.bf16.mxu0 0
    %159 = vmatpush1.bf16.xpose.msra.mxu0 0
    %160 = vmatprep.subr.bf16.mxu0 0
    %161 = vmatpush1.bf16.xpose.msra.mxu0 0
    %162 = vmatprep.subr.bf16.mxu0 0
    %163 = vmatpush1.bf16.xpose.msra.mxu0 0
    %164 = vmatprep.subr.bf16.mxu0 0
    %165 = vmatpush1.bf16.xpose.msra.mxu0 0
    %166 = vmatprep.subr.bf16.mxu0 0
    %167 = vmatpush1.bf16.xpose.msra.mxu0 0
    %168 = vmatprep.subr.bf16.mxu0 0
    %169 = vmatpush1.bf16.xpose.msra.mxu0 0
    %170 = vmatprep.subr.bf16.mxu0 0
    %171 = vmatpush1.bf16.xpose.msra.mxu0 0
    %172 = vmatprep.subr.bf16.mxu0 0
    %173 = vmatpush1.bf16.xpose.msra.mxu0 0
    %174 = vmatprep.subr.bf16.mxu0 0
    %175 = vmatpush1.bf16.xpose.msra.mxu0 0
    %176 = vmatprep.subr.bf16.mxu0 0
    %177 = vmatpush1.bf16.xpose.msra.mxu0 0
    %178 = vmatprep.mubr.bf16.mxu0 0
    %179 = vmatmul.mubr.bf16.gmra.mrb[0].mxu0 %v144
    %v180 = vpop.f32.mrb[0].mxu0
    %v181 = vadd.f32 0.0, %v180
    %v182 = vpop.f32.mrb[0].mxu0
    %v183 = vpop.f32.mrb[0].mxu0
    %v184 = vadd.f32 0.0, %v183
    %v185 = vpop.f32.mrb[0].mxu0
    %186 = vdwg.mxu0
    %v187 = vpack.c.bf16 %v184, %v181
    %v188 = vld [vmem:[%s2 + $0x51] sm:$0x1]
    %v189 = vld [vmem:[%s2 + $0x52] sm:$0x1]
    %v190 = vld [vmem:[%s2 + $0x53] sm:$0x1]
    %v191 = vld [vmem:[%s2 + $0x54] sm:$0x1]
    %s192 = sld [smem:[#allocation3]]
    %s193 = smul.f32 %s192, 0.125
    %s194 = sadd.f32 %s193, -0.96875
    %s195 = sld [smem:[#allocation3 + $0x1]]
    %s196 = smul.f32 %s195, 0.125
    %s197 = sadd.f32 %s196, -0.96875
    %s198 = sld [smem:[#allocation3 + $0x2]]
    %s199 = smul.f32 %s198, 0.125
    %s200 = sadd.f32 %s199, -0.96875
    %s201 = sld [smem:[#allocation3 + $0x3]]
    %s202 = smul.f32 %s201, 0.125
    %s203 = sadd.f32 %s202, -0.96875
    %v204 = vstv %s194
    %v205 = vmul.f32 %v204, %v188
    %v206 = vstv %s197
    %v207 = vmul.f32 %v206, %v189
    %v208 = vadd.f32 %v205, %v207
    %v209 = vadd.f32 %v208, %v190
    %v210 = vand.u32 2147483647, %v209
    %vm211 = vcmp.le.f32.partialorder %v210, 0.7853982
    %vm212 = vcmp.lt.s32.totalorder %v209, 0
    %v213 = vand.u32 %v209, 2139095040
    %v214 = vshrl.u32 %v213, 23
    %v215 = vsub.s32 %v214, 127
    %v216 = vand.u32 2147483647, %v209
    %v217 = vand.u32 %v216, 8388607
    %v218 = vor.u32 %v217, 8388608
    %v219 = vsub.s32 0, %v218
    %v220 = vadd.s32 %v215, 1
    %vm221 = vcmp.gt.s32.totalorder %v220, 0
    %v222 = vsel %vm221, %v220, 0
    %v223 = vshrl.u32 %v222, 5
    %v224 = vand.u32 %v222, 31
    %v225 = vsub.s32 32, %v224
    %v226 = vshrl.u32 683565275, %v225
    %v227 = vshll.u32 683565275, %v224
    %v228 = vshrl.u32 2475754826, %v225
    %v229 = vor.u32 %v227, %v228
    %v230 = vshll.u32 2475754826, %v224
    %v231 = vshrl.u32 2131351028, %v225
    %v232 = vor.u32 %v230, %v231
    %v233 = vshll.u32 2131351028, %v224
    %v234 = vshrl.u32 2102212464, %v225
    %v235 = vor.u32 %v233, %v234
    %v236 = vshll.u32 2102212464, %v224
    %v237 = vshrl.u32 920167782, %v225
    %v238 = vor.u32 %v236, %v237
    %v239 = vshll.u32 920167782, %v224
    %v240 = vshrl.u32 1326507024, %v225
    %v241 = vor.u32 %v239, %v240
    %vm242 = vcmp.lt.s32.totalorder %v223, 1
    %vm243 = vcmp.lt.s32.totalorder %v223, 2
    %vm244 = vcmp.lt.s32.totalorder %v223, 3
    %vm245 = vcmp.lt.s32.totalorder %v223, 4
    %v246 = vsel %vm242, %v226, %v229
    %v247 = vsel %vm245, %v235, 2102212464
    %v248 = vsel %vm244, %v232, %v247
    %v249 = vsel %vm243, %v246, %v248
    %v250 = vsel %vm242, %v229, %v232
    %v251 = vsel %vm245, %v238, 920167782
    %v252 = vsel %vm244, %v235, %v251
    %v253 = vsel %vm243, %v250, %v252
    %v254 = vsel %vm242, %v232, %v235
    %v255 = vsel %vm245, %v241, 1326507024
    %v256 = vsel %vm244, %v238, %v255
    %v257 = vsel %vm243, %v254, %v256
    %v258 = vshll.u32 %v218, 8
    %v259 = vmul.u32.u64.compose %v258, %v257
    %v260 = vextract.low.u32 %v259
    %v261 = vextract.high.u32 %v259
    %v262 = vmul.u32.u64.compose %v258, %v253
    %v263 = vextract.low.u32 %v262
    %v264 = vextract.high.u32 %v262
    %v265 = vmul.u32 %v258, %v249
    %v266 = vadd.s32 %v261, %v263
    %vm267 = vc.u32 %v261, %v263
    %v268 = vadd.s32 %v264, 1
    %v269 = vsel %vm267, %v268, %v264
    %v270 = vadd.s32 %v265, %v269
    %v271 = vadd.s32 %v270, 536870912
    %v272 = vshrl.u32 %v271, 30
    %v273 = vshll.u32 %v272, 30
    %v274 = vsub.s32 %v270, %v273
    %vm275 = vcmp.lt.s32.totalorder %v274, 0
    %v276 = vsub.s32 0, %v274
    %v277 = vsel %vm275, %v276, %v274
    %v278 = vclz %v277
    %v279 = vsub.s32 %v278, 2
    %vm280 = vcmp.gt.s32.totalorder 0, %v279
    %v281 = vsel %vm280, 0, %v279
    %v282 = vsub.s32 32, %v281
    %v283 = vshll.u32 %v274, %v281
    %v284 = vshrl.u32 %v266, %v282
    %v285 = vor.u32 %v283, %v284
    %v286 = vsub.s32 4294967266, %v281
    %v287 = vadd.s32 %v286, 127
    %v288 = vshll.u32 %v287, 23
    %v289 = vor.u32 4788187, %v288
    %v290 = vand.u32 2147483647, %v289
    %v292 = vcvt.s32.f32 %v285
    %v293 = vmul.f32 %v292, %v290
    %v294 = vxor.u32 %v293, 2147483648
    %v295 = vsel %vm212, %v294, %v293
    %v296 = vsub.s32 4, %v272
    %v297 = vsel %vm212, %v296, %v272
    %v298 = vsel %vm211, %v209, %v295
    %v299 = vsel %vm211, 0, %v297
    %v300 = vcosq.f32.pop %v298
    %v301 = vsinq.f32.pop %v298
    %vm302 = vweird.f32 %v209
    %v303 = vadd.s32 %v299, 3
    %v304 = vand.u32 %v303, 3
    %vm305 = vcmp.lt.s32.totalorder %v304, 2
    %vm306 = vcmp.eq.s32.totalorder %v304, 0
    %v307 = vxor.u32 %v301, 2147483648
    %v308 = vsel %vm306, %v300, %v307
    %vm309 = vcmp.eq.s32.totalorder %v304, 2
    %v310 = vxor.u32 %v300, 2147483648
    %v311 = vsel %vm309, %v310, %v301
    %v312 = vsel %vm305, %v308, %v311
    %v313 = vsel %vm302, nan, %v312
    %v314 = vstv %s200
    %v315 = vmul.f32 %v314, %v188
    %v316 = vstv %s203
    %v317 = vmul.f32 %v316, %v189
    %v318 = vadd.f32 %v315, %v317
    %v319 = vadd.f32 %v318, %v190
    %v320 = vand.u32 2147483647, %v319
    %vm321 = vcmp.le.f32.partialorder %v320, 0.7853982
    %vm322 = vcmp.lt.s32.totalorder %v319, 0
    %v323 = vand.u32 %v319, 2139095040
    %v324 = vshrl.u32 %v323, 23
    %v325 = vsub.s32 %v324, 127
    %v326 = vand.u32 2147483647, %v319
    %v327 = vand.u32 %v326, 8388607
    %v328 = vor.u32 %v327, 8388608
    %v329 = vsub.s32 0, %v328
    %v330 = vadd.s32 %v325, 1
    %vm331 = vcmp.gt.s32.totalorder %v330, 0
    %v332 = vsel %vm331, %v330, 0
    %v333 = vshrl.u32 %v332, 5
    %v334 = vand.u32 %v332, 31
    %v335 = vsub.s32 32, %v334
    %v336 = vshrl.u32 683565275, %v335
    %v337 = vshll.u32 683565275, %v334
    %v338 = vshrl.u32 2475754826, %v335
    %v339 = vor.u32 %v337, %v338
    %v340 = vshll.u32 2475754826, %v334
    %v341 = vshrl.u32 2131351028, %v335
    %v342 = vor.u32 %v340, %v341
    %v343 = vshll.u32 2131351028, %v334
    %v344 = vshrl.u32 2102212464, %v335
    %v345 = vor.u32 %v343, %v344
    %v346 = vshll.u32 2102212464, %v334
    %v347 = vshrl.u32 920167782, %v335
    %v348 = vor.u32 %v346, %v347
    %v349 = vshll.u32 920167782, %v334
    %v350 = vshrl.u32 1326507024, %v335
    %v351 = vor.u32 %v349, %v350
    %vm352 = vcmp.lt.s32.totalorder %v333, 1
    %vm353 = vcmp.lt.s32.totalorder %v333, 2
    %vm354 = vcmp.lt.s32.totalorder %v333, 3
    %vm355 = vcmp.lt.s32.totalorder %v333, 4
    %v356 = vsel %vm352, %v336, %v339
    %v357 = vsel %vm355, %v345, 2102212464
    %v358 = vsel %vm354, %v342, %v357
    %v359 = vsel %vm353, %v356, %v358
    %v360 = vsel %vm352, %v339, %v342
    %v361 = vsel %vm355, %v348, 920167782
    %v362 = vsel %vm354, %v345, %v361
    %v363 = vsel %vm353, %v360, %v362
    %v364 = vsel %vm352, %v342, %v345
    %v365 = vsel %vm355, %v351, 1326507024
    %v366 = vsel %vm354, %v348, %v365
    %v367 = vsel %vm353, %v364, %v366
    %v368 = vshll.u32 %v328, 8
    %v369 = vmul.u32.u64.compose %v368, %v367
    %v370 = vextract.low.u32 %v369
    %v371 = vextract.high.u32 %v369
    %v372 = vmul.u32.u64.compose %v368, %v363
    %v373 = vextract.low.u32 %v372
    %v374 = vextract.high.u32 %v372
    %v375 = vmul.u32 %v368, %v359
    %v376 = vadd.s32 %v371, %v373
    %vm377 = vc.u32 %v371, %v373
    %v378 = vadd.s32 %v374, 1
    %v379 = vsel %vm377, %v378, %v374
    %v380 = vadd.s32 %v375, %v379
    %v381 = vadd.s32 %v380, 536870912
    %v382 = vshrl.u32 %v381, 30
    %v383 = vshll.u32 %v382, 30
    %v384 = vsub.s32 %v380, %v383
    %vm385 = vcmp.lt.s32.totalorder %v384, 0
    %v386 = vsub.s32 0, %v384
    %v387 = vsel %vm385, %v386, %v384
    %v388 = vclz %v387
    %v389 = vsub.s32 %v388, 2
    %vm390 = vcmp.gt.s32.totalorder 0, %v389
    %v391 = vsel %vm390, 0, %v389
    %v392 = vsub.s32 32, %v391
    %v393 = vshll.u32 %v384, %v391
    %v394 = vshrl.u32 %v376, %v392
    %v395 = vor.u32 %v393, %v394
    %v396 = vsub.s32 4294967266, %v391
    %v397 = vadd.s32 %v396, 127
    %v398 = vshll.u32 %v397, 23
    %v399 = vor.u32 4788187, %v398
    %v400 = vand.u32 2147483647, %v399
    %v402 = vcvt.s32.f32 %v395
    %v403 = vmul.f32 %v402, %v400
    %v404 = vxor.u32 %v403, 2147483648
    %v405 = vsel %vm322, %v404, %v403
    %v406 = vsub.s32 4, %v382
    %v407 = vsel %vm322, %v406, %v382
    %v408 = vsel %vm321, %v319, %v405
    %v409 = vsel %vm321, 0, %v407
    %v410 = vcosq.f32.pop %v408
    %v411 = vsinq.f32.pop %v408
    %vm412 = vweird.f32 %v319
    %v413 = vadd.s32 %v409, 3
    %v414 = vand.u32 %v413, 3
    %vm415 = vcmp.lt.s32.totalorder %v414, 2
    %vm416 = vcmp.eq.s32.totalorder %v414, 0
    %v417 = vxor.u32 %v411, 2147483648
    %v418 = vsel %vm416, %v410, %v417
    %vm419 = vcmp.eq.s32.totalorder %v414, 2
    %v420 = vxor.u32 %v410, 2147483648
    %v421 = vsel %vm419, %v420, %v411
    %v422 = vsel %vm415, %v418, %v421
    %v423 = vsel %vm412, nan, %v422
    %v424 = vadd.f32 %v313, %v423
    %v425 = vmul.f32 %v424, 0.088388346
    %v426 = vadd.f32 %v425, %v191
    %vm427 = vcmask 253952
    %428 = vst.msk [vmem:[#allocation2] sm:$0x1] %vm427, %v426
    %s429 = sld [smem:[#allocation3 + $0x80]]
    %s430 = smul.f32 %s429, 0.125
    %s431 = sadd.f32 %s430, -0.96875
    %s432 = sld [smem:[#allocation3 + $0x81]]
    %s433 = smul.f32 %s432, 0.125
    %s434 = sadd.f32 %s433, -0.96875
    %s435 = sld [smem:[#allocation3 + $0x82]]
    %s436 = smul.f32 %s435, 0.125
    %s437 = sadd.f32 %s436, -0.96875
    %s438 = sld [smem:[#allocation3 + $0x83]]
    %s439 = smul.f32 %s438, 0.125
    %s440 = sadd.f32 %s439, -0.96875
    %v441 = vstv %s431
    %v442 = vmul.f32 %v441, %v188
    %v443 = vstv %s434
    %v444 = vmul.f32 %v443, %v189
    %v445 = vadd.f32 %v442, %v444
    %v446 = vadd.f32 %v445, %v190
    %v447 = vand.u32 2147483647, %v446
    %vm448 = vcmp.le.f32.partialorder %v447, 0.7853982
    %vm449 = vcmp.lt.s32.totalorder %v446, 0
    %v450 = vand.u32 %v446, 2139095040
    %v451 = vshrl.u32 %v450, 23
    %v452 = vsub.s32 %v451, 127
    %v453 = vand.u32 2147483647, %v446
    %v454 = vand.u32 %v453, 8388607
    %v455 = vor.u32 %v454, 8388608
    %v456 = vsub.s32 0, %v455
    %v457 = vadd.s32 %v452, 1
    %vm458 = vcmp.gt.s32.totalorder %v457, 0
    %v459 = vsel %vm458, %v457, 0
    %v460 = vshrl.u32 %v459, 5
    %v461 = vand.u32 %v459, 31
    %v462 = vsub.s32 32, %v461
    %v463 = vshrl.u32 683565275, %v462
    %v464 = vshll.u32 683565275, %v461
    %v465 = vshrl.u32 2475754826, %v462
    %v466 = vor.u32 %v464, %v465
    %v467 = vshll.u32 2475754826, %v461
    %v468 = vshrl.u32 2131351028, %v462
    %v469 = vor.u32 %v467, %v468
    %v470 = vshll.u32 2131351028, %v461
    %v471 = vshrl.u32 2102212464, %v462
    %v472 = vor.u32 %v470, %v471
    %v473 = vshll.u32 2102212464, %v461
    %v474 = vshrl.u32 920167782, %v462
    %v475 = vor.u32 %v473, %v474
    %v476 = vshll.u32 920167782, %v461
    %v477 = vshrl.u32 1326507024, %v462
    %v478 = vor.u32 %v476, %v477
    %vm479 = vcmp.lt.s32.totalorder %v460, 1
    %vm480 = vcmp.lt.s32.totalorder %v460, 2
    %vm481 = vcmp.lt.s32.totalorder %v460, 3
    %vm482 = vcmp.lt.s32.totalorder %v460, 4
    %v483 = vsel %vm479, %v463, %v466
    %v484 = vsel %vm482, %v472, 2102212464
    %v485 = vsel %vm481, %v469, %v484
    %v486 = vsel %vm480, %v483, %v485
    %v487 = vsel %vm479, %v466, %v469
    %v488 = vsel %vm482, %v475, 920167782
    %v489 = vsel %vm481, %v472, %v488
    %v490 = vsel %vm480, %v487, %v489
    %v491 = vsel %vm479, %v469, %v472
    %v492 = vsel %vm482, %v478, 1326507024
    %v493 = vsel %vm481, %v475, %v492
    %v494 = vsel %vm480, %v491, %v493
    %v495 = vshll.u32 %v455, 8
    %v496 = vmul.u32.u64.compose %v495, %v494
    %v497 = vextract.low.u32 %v496
    %v498 = vextract.high.u32 %v496
    %v499 = vmul.u32.u64.compose %v495, %v490
    %v500 = vextract.low.u32 %v499
    %v501 = vextract.high.u32 %v499
    %v502 = vmul.u32 %v495, %v486
    %v503 = vadd.s32 %v498, %v500
    %vm504 = vc.u32 %v498, %v500
    %v505 = vadd.s32 %v501, 1
    %v506 = vsel %vm504, %v505, %v501
    %v507 = vadd.s32 %v502, %v506
    %v508 = vadd.s32 %v507, 536870912
    %v509 = vshrl.u32 %v508, 30
    %v510 = vshll.u32 %v509, 30
    %v511 = vsub.s32 %v507, %v510
    %vm512 = vcmp.lt.s32.totalorder %v511, 0
    %v513 = vsub.s32 0, %v511
    %v514 = vsel %vm512, %v513, %v511
    %v515 = vclz %v514
    %v516 = vsub.s32 %v515, 2
    %vm517 = vcmp.gt.s32.totalorder 0, %v516
    %v518 = vsel %vm517, 0, %v516
    %v519 = vsub.s32 32, %v518
    %v520 = vshll.u32 %v511, %v518
    %v521 = vshrl.u32 %v503, %v519
    %v522 = vor.u32 %v520, %v521
    %v523 = vsub.s32 4294967266, %v518
    %v524 = vadd.s32 %v523, 127
    %v525 = vshll.u32 %v524, 23
    %v526 = vor.u32 4788187, %v525
    %v527 = vand.u32 2147483647, %v526
    %v529 = vcvt.s32.f32 %v522
    %v530 = vmul.f32 %v529, %v527
    %v531 = vxor.u32 %v530, 2147483648
    %v532 = vsel %vm449, %v531, %v530
    %v533 = vsub.s32 4, %v509
    %v534 = vsel %vm449, %v533, %v509
    %v535 = vsel %vm448, %v446, %v532
    %v536 = vsel %vm448, 0, %v534
    %v537 = vcosq.f32.pop %v535
    %v538 = vsinq.f32.pop %v535
    %vm539 = vweird.f32 %v446
    %v540 = vadd.s32 %v536, 3
    %v541 = vand.u32 %v540, 3
    %vm542 = vcmp.lt.s32.totalorder %v541, 2
    %vm543 = vcmp.eq.s32.totalorder %v541, 0
    %v544 = vxor.u32 %v538, 2147483648
    %v545 = vsel %vm543, %v537, %v544
    %vm546 = vcmp.eq.s32.totalorder %v541, 2
    %v547 = vxor.u32 %v537, 2147483648
    %v548 = vsel %vm546, %v547, %v538
    %v549 = vsel %vm542, %v545, %v548
    %v550 = vsel %vm539, nan, %v549
    %v551 = vstv %s437
    %v552 = vmul.f32 %v551, %v188
    %v553 = vstv %s440
    %v554 = vmul.f32 %v553, %v189
    %v555 = vadd.f32 %v552, %v554
    %v556 = vadd.f32 %v555, %v190
    %v557 = vand.u32 2147483647, %v556
    %vm558 = vcmp.le.f32.partialorder %v557, 0.7853982
    %vm559 = vcmp.lt.s32.totalorder %v556, 0
    %v560 = vand.u32 %v556, 2139095040
    %v561 = vshrl.u32 %v560, 23
    %v562 = vsub.s32 %v561, 127
    %v563 = vand.u32 2147483647, %v556
    %v564 = vand.u32 %v563, 8388607
    %v565 = vor.u32 %v564, 8388608
    %v566 = vsub.s32 0, %v565
    %v567 = vadd.s32 %v562, 1
    %vm568 = vcmp.gt.s32.totalorder %v567, 0
    %v569 = vsel %vm568, %v567, 0
    %v570 = vshrl.u32 %v569, 5
    %v571 = vand.u32 %v569, 31
    %v572 = vsub.s32 32, %v571
    %v573 = vshrl.u32 683565275, %v572
    %v574 = vshll.u32 683565275, %v571
    %v575 = vshrl.u32 2475754826, %v572
    %v576 = vor.u32 %v574, %v575
    %v577 = vshll.u32 2475754826, %v571
    %v578 = vshrl.u32 2131351028, %v572
    %v579 = vor.u32 %v577, %v578
    %v580 = vshll.u32 2131351028, %v571
    %v581 = vshrl.u32 2102212464, %v572
    %v582 = vor.u32 %v580, %v581
    %v583 = vshll.u32 2102212464, %v571
    %v584 = vshrl.u32 920167782, %v572
    %v585 = vor.u32 %v583, %v584
    %v586 = vshll.u32 920167782, %v571
    %v587 = vshrl.u32 1326507024, %v572
    %v588 = vor.u32 %v586, %v587
    %vm589 = vcmp.lt.s32.totalorder %v570, 1
    %vm590 = vcmp.lt.s32.totalorder %v570, 2
    %vm591 = vcmp.lt.s32.totalorder %v570, 3
    %vm592 = vcmp.lt.s32.totalorder %v570, 4
    %v593 = vsel %vm589, %v573, %v576
    %v594 = vsel %vm592, %v582, 2102212464
    %v595 = vsel %vm591, %v579, %v594
    %v596 = vsel %vm590, %v593, %v595
    %v597 = vsel %vm589, %v576, %v579
    %v598 = vsel %vm592, %v585, 920167782
    %v599 = vsel %vm591, %v582, %v598
    %v600 = vsel %vm590, %v597, %v599
    %v601 = vsel %vm589, %v579, %v582
    %v602 = vsel %vm592, %v588, 1326507024
    %v603 = vsel %vm591, %v585, %v602
    %v604 = vsel %vm590, %v601, %v603
    %v605 = vshll.u32 %v565, 8
    %v606 = vmul.u32.u64.compose %v605, %v604
    %v607 = vextract.low.u32 %v606
    %v608 = vextract.high.u32 %v606
    %v609 = vmul.u32.u64.compose %v605, %v600
    %v610 = vextract.low.u32 %v609
    %v611 = vextract.high.u32 %v609
    %v612 = vmul.u32 %v605, %v596
    %v613 = vadd.s32 %v608, %v610
    %vm614 = vc.u32 %v608, %v610
    %v615 = vadd.s32 %v611, 1
    %v616 = vsel %vm614, %v615, %v611
    %v617 = vadd.s32 %v612, %v616
    %v618 = vadd.s32 %v617, 536870912
    %v619 = vshrl.u32 %v618, 30
    %v620 = vshll.u32 %v619, 30
    %v621 = vsub.s32 %v617, %v620
    %vm622 = vcmp.lt.s32.totalorder %v621, 0
    %v623 = vsub.s32 0, %v621
    %v624 = vsel %vm622, %v623, %v621
    %v625 = vclz %v624
    %v626 = vsub.s32 %v625, 2
    %vm627 = vcmp.gt.s32.totalorder 0, %v626
    %v628 = vsel %vm627, 0, %v626
    %v629 = vsub.s32 32, %v628
    %v630 = vshll.u32 %v621, %v628
    %v631 = vshrl.u32 %v613, %v629
    %v632 = vor.u32 %v630, %v631
    %v633 = vsub.s32 4294967266, %v628
    %v634 = vadd.s32 %v633, 127
    %v635 = vshll.u32 %v634, 23
    %v636 = vor.u32 4788187, %v635
    %v637 = vand.u32 2147483647, %v636
    %v639 = vcvt.s32.f32 %v632
    %v640 = vmul.f32 %v639, %v637
    %v641 = vxor.u32 %v640, 2147483648
    %v642 = vsel %vm559, %v641, %v640
    %v643 = vsub.s32 4, %v619
    %v644 = vsel %vm559, %v643, %v619
    %v645 = vsel %vm558, %v556, %v642
    %v646 = vsel %vm558, 0, %v644
    %v647 = vcosq.f32.pop %v645
    %v648 = vsinq.f32.pop %v645
    %vm649 = vweird.f32 %v556
    %v650 = vadd.s32 %v646, 3
    %v651 = vand.u32 %v650, 3
    %vm652 = vcmp.lt.s32.totalorder %v651, 2
    %vm653 = vcmp.eq.s32.totalorder %v651, 0
    %v654 = vxor.u32 %v648, 2147483648
    %v655 = vsel %vm653, %v647, %v654
    %vm656 = vcmp.eq.s32.totalorder %v651, 2
    %v657 = vxor.u32 %v647, 2147483648
    %v658 = vsel %vm656, %v657, %v648
    %v659 = vsel %vm652, %v655, %v658
    %v660 = vsel %vm649, nan, %v659
    %v661 = vadd.f32 %v550, %v660
    %v662 = vmul.f32 %v661, 0.088388346
    %v663 = vadd.f32 %v662, %v191
    %664 = vst.msk [vmem:[#allocation2 + $0x1] sm:$0x1] %vm427, %v663
    %v665 = vld [vmem:[#allocation2] sm:$0x3]
    %v666 = vpack.c.bf16 %v665, %v665
    %v668 = vsel %vm97, %v666, 0
    %670 = vmatprep.subr.bf16.mxu0 0
    %671 = vmatpush1.bf16.xpose.msra.mxu0 %v99
    %672 = vmatprep.subr.bf16.mxu0 0
    %673 = vmatpush1.bf16.xpose.msra.mxu0 0
    %674 = vmatprep.subr.bf16.mxu0 0
    %675 = vmatpush1.bf16.xpose.msra.mxu0 0
    %676 = vmatprep.subr.bf16.mxu0 0
    %677 = vmatpush1.bf16.xpose.msra.mxu0 0
    %678 = vmatprep.subr.bf16.mxu0 0
    %679 = vmatpush1.bf16.xpose.msra.mxu0 0
    %680 = vmatprep.subr.bf16.mxu0 0
    %681 = vmatpush1.bf16.xpose.msra.mxu0 0
    %682 = vmatprep.subr.bf16.mxu0 0
    %683 = vmatpush1.bf16.xpose.msra.mxu0 0
    %684 = vmatprep.subr.bf16.mxu0 0
    %685 = vmatpush1.bf16.xpose.msra.mxu0 0
    %686 = vmatprep.subr.bf16.mxu0 0
    %687 = vmatpush1.bf16.xpose.msra.mxu0 0
    %688 = vmatprep.subr.bf16.mxu0 0
    %689 = vmatpush1.bf16.xpose.msra.mxu0 0
    %690 = vmatprep.subr.bf16.mxu0 0
    %691 = vmatpush1.bf16.xpose.msra.mxu0 0
    %692 = vmatprep.subr.bf16.mxu0 0
    %693 = vmatpush1.bf16.xpose.msra.mxu0 0
    %694 = vmatprep.subr.bf16.mxu0 0
    %695 = vmatpush1.bf16.xpose.msra.mxu0 0
    %696 = vmatprep.subr.bf16.mxu0 0
    %697 = vmatpush1.bf16.xpose.msra.mxu0 0
    %698 = vmatprep.subr.bf16.mxu0 0
    %699 = vmatpush1.bf16.xpose.msra.mxu0 0
    %700 = vmatprep.subr.bf16.mxu0 0
    %701 = vmatpush1.bf16.xpose.msra.mxu0 0
    %702 = vmatprep.mubr.bf16.mxu0 0
    %703 = vmatmul.mubr.bf16.gmra.mrb[0].mxu0 %v668
    %v704 = vpop.f32.mrb[0].mxu0
    %v705 = vadd.f32 0.0, %v704
    %v706 = vpop.f32.mrb[0].mxu0
    %v707 = vpop.f32.mrb[0].mxu0
    %v708 = vpop.f32.mrb[0].mxu0
    %709 = vdwg.mxu0
    %vm710 = vcmask 123904
    %v711 = vsel %vm710, %v705, -inf
    %712 = vmax.xlane.f32.xlu0 %v711
    %v713 = vpop.xlane.xlu0 %712
    %v714 = vsub.f32 %v705, %v713
    %v715 = vmul.f32 %v714, 1.442695
    %v716 = vpow.pop %v715
    %v717 = vsel %vm710, %v716, 0.0
    %718 = vadd.xlane.f32.xlu0 %v717
    %v719 = vpop.xlane.xlu0 %718
    %v720 = vrcp.pop %v719
    %v721 = vmul.f32 %v716, %v720
    %v722 = vpack.c.bf16 %v721, %v721
    %vm723 = vcmask 130048
    %v725 = vsel %vm723, %v722, 0
    %727 = vmatprep.subr.bf16.mxu0 0
    %728 = vmatpush1.bf16.msra.mxu0 %v187
    %729 = vmatprep.subr.bf16.mxu0 0
    %730 = vmatpush1.bf16.msra.mxu0 0
    %731 = vmatprep.subr.bf16.mxu0 0
    %732 = vmatpush1.bf16.msra.mxu0 0
    %733 = vmatprep.subr.bf16.mxu0 0
    %734 = vmatpush1.bf16.msra.mxu0 0
    %735 = vmatprep.subr.bf16.mxu0 0
    %736 = vmatpush1.bf16.msra.mxu0 0
    %737 = vmatprep.subr.bf16.mxu0 0
    %738 = vmatpush1.bf16.msra.mxu0 0
    %739 = vmatprep.subr.bf16.mxu0 0
    %740 = vmatpush1.bf16.msra.mxu0 0
    %741 = vmatprep.subr.bf16.mxu0 0
    %742 = vmatpush1.bf16.msra.mxu0 0
    %743 = vmatprep.subr.bf16.mxu0 0
    %744 = vmatpush1.bf16.msra.mxu0 0
    %745 = vmatprep.subr.bf16.mxu0 0
    %746 = vmatpush1.bf16.msra.mxu0 0
    %747 = vmatprep.subr.bf16.mxu0 0
    %748 = vmatpush1.bf16.msra.mxu0 0
    %749 = vmatprep.subr.bf16.mxu0 0
    %750 = vmatpush1.bf16.msra.mxu0 0
    %751 = vmatprep.subr.bf16.mxu0 0
    %752 = vmatpush1.bf16.msra.mxu0 0
    %753 = vmatprep.subr.bf16.mxu0 0
    %754 = vmatpush1.bf16.msra.mxu0 0
    %755 = vmatprep.subr.bf16.mxu0 0
    %756 = vmatpush1.bf16.msra.mxu0 0
    %757 = vmatprep.subr.bf16.mxu0 0
    %758 = vmatpush1.bf16.msra.mxu0 0
    %759 = vmatprep.mubr.bf16.mxu0 0
    %760 = vmatmul.mubr.bf16.gmra.mrb[0].mxu0 %v725
    %v761 = vpop.f32.mrb[0].mxu0
    %v762 = vadd.f32 0.0, %v761
    %v763 = vpop.f32.mrb[0].mxu0
    %v764 = vpop.f32.mrb[0].mxu0
    %v765 = vpop.f32.mrb[0].mxu0
    %766 = vdwg.mxu0
    %767 = vst.msk [vmem:[%s3] sm:$0x3] %vm710, %v762
    // Predicated region
    $region18: #{sambox_forward.1} parent=1 // pred_check
      _
    $region19: #{sambox_forward.1} parent=1 // pred_check_branch
      %769 = sbr.rel (0) target = $region21
    $region20: #{sambox_forward.1} parent=1 // pred_region
      _
    $region21: #{sambox_forward.1} parent=1 // pred_fallthru
      _
    // Predicated region
    $region22: #{sambox_forward.1} parent=1 // pred_check
      _
    $region23: #{sambox_forward.1} parent=1 // pred_check_branch
      %771 = sbr.rel (0) target = $region25
    $region24: #{sambox_forward.1} parent=1 // pred_region
      _
    $region25: #{sambox_forward.1} parent=1 // pred_fallthru
      _
    %772 = vsyncpa [#allocation4], 1

</llo_original>
